<compile_context>
chip_gen: v7x
topology: tpu7x:2x2x1
jax: 0.10.0
libtpu: 0.0.40
codegen_flags: <defaults>
</compile_context>

<pallas_src>
import functools

import jax
import jax.numpy as jnp
from jax.experimental import pallas as pl
from jax.experimental.pallas import tpu as pltpu


# Resident-VMEM budget used for tile sizing and the scoped VMEM limit handed
# to Mosaic.  36 MiB working set + headroom fits v7x's 64 MiB physical VMEM
# (v5e/v6e have 128 MiB); 48 MiB is above v5e's 16 MiB scoped default.
_RESIDENT_BUDGET_BYTES = 36 * 1024 * 1024
_VMEM_LIMIT_BYTES = 48 * 1024 * 1024


def _round_up(x, m):
    return -(-x // m) * m


def _round_down(x, m):
    return (x // m) * m


def _choose_tiles(b, c, itemsize):
    """Pick (tile_b, tile_c) from a byte budget.

    Per-element resident bytes ~= 2 * itemsize (double-buffered native input)
    + 3 * 4 (f32 cast / shifted / exp temporaries).  Scratch accumulators are
    (tile_b, 1) and negligible.
    """
    per_elem = 2 * itemsize + 3 * 4

    rows_for_full_c = _RESIDENT_BUDGET_BYTES // (per_elem * c)
    if rows_for_full_c >= 8:
        # Single class tile.  Row tile capped by bytes AND by ~ceil(B/2) so
        # the "parallel" row axis has >= 2 steps (keeps both v7x TCs busy).
        tile_c = c
        tile_b = min(rows_for_full_c, _round_up(pl.cdiv(b, 2), 8))
        tile_b = max(8, _round_down(tile_b, 8))
        if tile_b >= b:
            tile_b = b          # tiny batch: one full-array row tile
        return tile_b, tile_c

    # Vocab-scale C: tile the class axis too (online softmax in the kernel).
    tile_b = min(b, 128)
    tile_c = _round_down(_RESIDENT_BUDGET_BYTES // (per_elem * tile_b), 128)
    tile_c = max(128, min(tile_c, _round_up(c, 128)))
    return tile_b, tile_c


def _ce_online_kernel(logits_ref, targets_ref, loss_ref,
                      m_acc, l_acc, t_acc, *, num_classes, mask_cols):
    """Online-softmax cross entropy over class tiles.

    grid = (row_tiles, class_tiles); class axis is last ("arbitrary").
    Scratch (per row tile):
      m_acc : running row max                (tile_b, 1) f32
      l_acc : running sum exp(x - m)         (tile_b, 1) f32
      t_acc : gathered target logit          (tile_b, 1) f32
    """
    j = pl.program_id(1)
    last_j = pl.num_programs(1) - 1

    @pl.when(j == 0)
    def _init():
        # Large negative finite (not -inf) so exp(m_prev - m_new) is a clean 0
        # on the first class tile instead of a potential inf - inf.
        m_acc[...] = jnp.full(m_acc.shape, -1e30, dtype=jnp.float32)
        l_acc[...] = jnp.zeros(l_acc.shape, dtype=jnp.float32)
        t_acc[...] = jnp.zeros(t_acc.shape, dtype=jnp.float32)

    x = logits_ref[...]                       # (tile_b, tile_c), native dtype
    tgt = targets_ref[...]                    # (tile_b, 1) int32
    tile_c = x.shape[-1]

    # Global class index of every column in this tile.
    col = jax.lax.broadcasted_iota(jnp.int32, (1, tile_c), 1) + j * tile_c

    if mask_cols:
        # Ragged last class tile: the clipped DMA leaves garbage in columns
        # >= num_classes; neutralize them for the max / exp-sum.
        neg = jnp.array(jnp.finfo(x.dtype).min, dtype=x.dtype)
        x = jnp.where(col < num_classes, x, neg)

    # --- native-dtype (bf16-friendly, exact) part: max + one-hot gather -----
    tile_max = jnp.max(x, axis=-1, keepdims=True).astype(jnp.float32)
    onehot = col == tgt                                       # (tile_b, tile_c)
    # Exactly one column matches per (valid) row, so a bf16 sum is exact.
    t_tile = jnp.sum(jnp.where(onehot, x, jnp.zeros((), x.dtype)),
                     axis=-1, keepdims=True).astype(jnp.float32)

    # --- f32 part: exp + accumulate ------------------------------------------
    m_prev = m_acc[...]
    m_new = jnp.maximum(m_prev, tile_max)
    alpha = jnp.exp(m_prev - m_new)                           # per-row rescale
    p_sum = jnp.sum(jnp.exp(x.astype(jnp.float32) - m_new),
                    axis=-1, keepdims=True)

    l_acc[...] = l_acc[...] * alpha + p_sum
    t_acc[...] = t_acc[...] + t_tile
    m_acc[...] = m_new

    @pl.when(j == last_j)
    def _finalize():
        # loss_i = logsumexp(logits_i) - logits_i[target_i]
        loss_ref[...] = m_acc[...] + jnp.log(l_acc[...]) - t_acc[...]


@functools.partial(jax.jit,
                   static_argnames=("hierarchy_level", "block_b", "block_c"))
def ce_loss_forward(embeddings, instance_targets, hierarchy_level=None,
                    block_b=None, block_c=None):
    """Pallas implementation of CELoss.forward.

    embeddings:        (B, num_classes) float logits (f32 or bf16)
    instance_targets:  (B,) int class ids, or (B, L) if hierarchy_level is set
    block_b/block_c:   optional static tile overrides (testing / tuning)
    """
    if hierarchy_level is not None:
        instance_targets = instance_targets[:, hierarchy_level]

    b_orig, c = embeddings.shape
    targets = instance_targets.astype(jnp.int32).reshape(b_orig, 1)

    # Tiny batches (< 8 rows) padded to one sublane group; padded rows use
    # target 0 (valid) and are dropped before the mean.
    b = b_orig
    if b < 8:
        pad = 8 - b
        embeddings = jnp.pad(embeddings, ((0, pad), (0, 0)))
        targets = jnp.pad(targets, ((0, pad), (0, 0)))
        b = 8

    itemsize = jnp.dtype(embeddings.dtype).itemsize
    tile_b, tile_c = _choose_tiles(b, c, itemsize)
    if block_b is not None:
        tile_b = block_b
    if block_c is not None:
        tile_c = block_c

    num_row_tiles = pl.cdiv(b, tile_b)
    num_class_tiles = pl.cdiv(c, tile_c)
    padded_b = num_row_tiles * tile_b
    mask_cols = (num_class_tiles * tile_c) != c

    kernel = functools.partial(_ce_online_kernel,
                               num_classes=c, mask_cols=mask_cols)

    cost = pl.CostEstimate(
        flops=6 * b * c,
        transcendentals=b * c + 2 * b * num_class_tiles,
        bytes_accessed=b * c * itemsize + b * 4 + padded_b * 4,
    )

    per_row = pl.pallas_call(
        kernel,
        out_shape=jax.ShapeDtypeStruct((padded_b, 1), jnp.float32),
        grid=(num_row_tiles, num_class_tiles),
        in_specs=[
            pl.BlockSpec((tile_b, tile_c), lambda i, j: (i, j)),   # logits tile
            pl.BlockSpec((tile_b, 1), lambda i, j: (i, 0)),        # targets
        ],
        out_specs=pl.BlockSpec((tile_b, 1), lambda i, j: (i, 0)),  # row losses
        scratch_shapes=[
            pltpu.VMEM((tile_b, 1), jnp.float32),   # m_acc
            pltpu.VMEM((tile_b, 1), jnp.float32),   # l_acc
            pltpu.VMEM((tile_b, 1), jnp.float32),   # t_acc
        ],
        compiler_params=pltpu.CompilerParams(
            dimension_semantics=("parallel", "arbitrary"),
            vmem_limit_bytes=_VMEM_LIMIT_BYTES,
        ),
        cost_estimate=cost,
    )(embeddings, targets)

    # Mean over the true batch; padded / ragged rows live at indices >= b_orig
    # and are discarded by the slice.
    return jnp.sum(per_row[:b_orig, 0]) / b_orig


def init_celoss_params(key, embedding_size, num_classes):
    """Deterministic init of the module's nn.Linear(embedding_size, num_classes).

    NOTE: the PyTorch forward never uses self.linear; parameters are created
    only to mirror __init__ faithfully.
    """
    kw, kb = jax.random.split(key)
    bound = 1.0 / jnp.sqrt(embedding_size)
    weight = jax.random.uniform(kw, (num_classes, embedding_size),
                                minval=-bound, maxval=bound, dtype=jnp.float32)
    bias = jax.random.uniform(kb, (num_classes,),
                              minval=-bound, maxval=bound, dtype=jnp.float32)
    return {"weight": weight, "bias": bias}


def _ref_ce(logits, tgt):
    logits = logits.astype(jnp.float32)
    picked = jnp.take_along_axis(
        logits, tgt[:, None].astype(jnp.int32), axis=-1)[:, 0]
    return jnp.mean(jax.nn.logsumexp(logits, axis=-1) - picked)


if __name__ == "__main__":
    key = jax.random.PRNGKey(0)
    k_emb, k_tgt, k_param, k_htgt, k_emb2, k_tgt2 = jax.random.split(key, 6)

    batch = 16
    embedding_size = 32
    num_classes = 32          # embeddings feed CE directly, so last dim == num_classes

    # unused-by-forward linear params (kept for __init__ parity)
    params = init_celoss_params(k_param, embedding_size, num_classes)

    embeddings = jax.random.normal(k_emb, (batch, num_classes), dtype=jnp.float32)
    instance_targets = jax.random.randint(k_tgt, (batch,), 0, num_classes,
                                          dtype=jnp.int32)

    # 1) plain forward (auto tiles: 2 row tiles x 1 class tile)
    loss = ce_loss_forward(embeddings, instance_targets)
    jax.block_until_ready(loss)
    assert jnp.allclose(loss, _ref_ce(embeddings, instance_targets),
                        atol=1e-5, rtol=1e-5), loss

    # 2) hierarchy_level glue: targets shaped (B, L), select column 1
    hier_targets = jax.random.randint(k_htgt, (batch, 3), 0, num_classes,
                                      dtype=jnp.int32)
    loss_h = ce_loss_forward(embeddings, hier_targets, hierarchy_level=1)
    jax.block_until_ready(loss_h)
    assert jnp.allclose(loss_h, _ref_ce(embeddings, hier_targets[:, 1]),
                        atol=1e-5, rtol=1e-5), loss_h

    # 3) bf16 logits (native-dtype max / one-hot gather; f32 exp + accumulate)
    emb_bf16 = embeddings.astype(jnp.bfloat16)
    loss_bf16 = ce_loss_forward(emb_bf16, instance_targets)
    jax.block_until_ready(loss_bf16)
    assert jnp.allclose(loss_bf16, _ref_ce(emb_bf16, instance_targets),
                        atol=1e-4, rtol=1e-4), loss_bf16

    # 4) forced class-axis tiling with ragged row AND class tails: exercises
    #    the online-softmax accumulator + padded-column masking at small scale.
    b_big, c_big = 20, 320     # 3 row tiles of 8 (last ragged), 3 class tiles of 128 (last ragged)
    emb2 = jax.random.normal(k_emb2, (b_big, c_big), dtype=jnp.float32)
    tgt2 = jax.random.randint(k_tgt2, (b_big,), 0, c_big, dtype=jnp.int32)
    loss2 = ce_loss_forward(emb2, tgt2, block_b=8, block_c=128)
    jax.block_until_ready(loss2)
    assert jnp.allclose(loss2, _ref_ce(emb2, tgt2), atol=1e-5, rtol=1e-5), loss2

    print("KERNEL_OK")
</pallas_src>

<mosaic_0001>
module attributes {stable_mosaic.version = 11 : i64} {
  func.func @_ce_online_kernel(%arg0: i32, %arg1: i32, %arg2: memref<8x32xf32, #tpu.memory_space<vmem>>, %arg3: memref<8x1xi32, #tpu.memory_space<vmem>>, %arg4: memref<8x1xf32, #tpu.memory_space<vmem>>, %arg5: memref<8x1xf32, #tpu.memory_space<vmem>>, %arg6: memref<8x1xf32, #tpu.memory_space<vmem>>, %arg7: memref<8x1xf32, #tpu.memory_space<vmem>>) attributes {dimension_semantics = [#tpu.dimension_semantics<parallel>, #tpu.dimension_semantics<arbitrary>], iteration_bounds = array<i64: 2, 1>, scalar_prefetch = 0 : i64, scratch_operands = 3 : i64, tpu.core_type = #tpu.core_type<tc>, window_params = [{transform_indices = @transform_0, window_bounds = array<i64: 8, 32>}, {transform_indices = @transform_1, window_bounds = array<i64: 8, 1>}, {transform_indices = @transform_2, window_bounds = array<i64: 8, 1>}]} {
    %c0_i32 = arith.constant 0 : i32
    %0 = arith.cmpi eq, %arg1, %c0_i32 : i32
    %1 = arith.extui %0 : i1 to i32
    %c0_i32_0 = arith.constant 0 : i32
    %2 = arith.cmpi ne, %1, %c0_i32_0 : i32
    scf.if %2 {
      %cst_21 = arith.constant -1.000000e+30 : f32
      %38 = vector.broadcast %cst_21 : f32 to vector<8x1xf32>
      %c0_22 = arith.constant 0 : index
      %c0_23 = arith.constant 0 : index
      %39 = vector.load %arg5[%c0_22, %c0_23] : memref<8x1xf32, #tpu.memory_space<vmem>>, vector<8x1xf32>
      tpu.vector_store %arg5[%c0_22, %c0_23], %38 {strides = array<i32>} : memref<8x1xf32, #tpu.memory_space<vmem>>, vector<8x1xf32>,
      %cst_24 = arith.constant 0.000000e+00 : f32
      %40 = vector.broadcast %cst_24 : f32 to vector<8x1xf32>
      %c0_25 = arith.constant 0 : index
      %c0_26 = arith.constant 0 : index
      %41 = vector.load %arg6[%c0_25, %c0_26] : memref<8x1xf32, #tpu.memory_space<vmem>>, vector<8x1xf32>
      tpu.vector_store %arg6[%c0_25, %c0_26], %40 {strides = array<i32>} : memref<8x1xf32, #tpu.memory_space<vmem>>, vector<8x1xf32>,
      %cst_27 = arith.constant 0.000000e+00 : f32
      %42 = vector.broadcast %cst_27 : f32 to vector<8x1xf32>
      %c0_28 = arith.constant 0 : index
      %c0_29 = arith.constant 0 : index
      %43 = vector.load %arg7[%c0_28, %c0_29] : memref<8x1xf32, #tpu.memory_space<vmem>>, vector<8x1xf32>
      tpu.vector_store %arg7[%c0_28, %c0_29], %42 {strides = array<i32>} : memref<8x1xf32, #tpu.memory_space<vmem>>, vector<8x1xf32>,
    } else {
    }
    %c0 = arith.constant 0 : index
    %c0_1 = arith.constant 0 : index
    %3 = vector.load %arg2[%c0, %c0_1] : memref<8x32xf32, #tpu.memory_space<vmem>>, vector<8x32xf32>
    %c0_2 = arith.constant 0 : index
    %c0_3 = arith.constant 0 : index
    %4 = vector.load %arg3[%c0_2, %c0_3] : memref<8x1xi32, #tpu.memory_space<vmem>>, vector<8x1xi32>
    %5 = tpu.iota {dimensions = array<i32: 1>} : vector<1x32xi32>
    %c32_i32 = arith.constant 32 : i32
    %6 = arith.muli %arg1, %c32_i32 : i32
    %7 = vector.broadcast %6 : i32 to vector<1x32xi32>
    %8 = arith.addi %5, %7 : vector<1x32xi32>
    %cst = arith.constant dense<0xFF800000> : vector<8xf32>
    %9 = vector.multi_reduction <maximumf>, %3, %cst [1] : vector<8x32xf32> to vector<8xf32>
    %10 = vector.shape_cast %9 : vector<8xf32> to vector<8x1xf32>
    %11 = vector.broadcast %8 : vector<1x32xi32> to vector<8x32xi32>
    %12 = vector.broadcast %4 : vector<8x1xi32> to vector<8x32xi32>
    %13 = arith.cmpi eq, %11, %12 : vector<8x32xi32>
    %cst_4 = arith.constant 0.000000e+00 : f32
    %14 = vector.broadcast %cst_4 : f32 to vector<8x32xf32>
    %15 = arith.select %13, %3, %14 : vector<8x32xi1>, vector<8x32xf32>
    %cst_5 = arith.constant dense<0.000000e+00> : vector<8xf32>
    %16 = vector.multi_reduction <add>, %15, %cst_5 [1] : vector<8x32xf32> to vector<8xf32>
    %17 = vector.shape_cast %16 : vector<8xf32> to vector<8x1xf32>
    %c0_6 = arith.constant 0 : index
    %c0_7 = arith.constant 0 : index
    %18 = vector.load %arg5[%c0_6, %c0_7] : memref<8x1xf32, #tpu.memory_space<vmem>>, vector<8x1xf32>
    %19 = arith.maximumf %18, %10 : vector<8x1xf32>
    %20 = arith.subf %18, %19 : vector<8x1xf32>
    %21 = math.exp %20 : vector<8x1xf32>
    %22 = vector.broadcast %19 : vector<8x1xf32> to vector<8x32xf32>
    %23 = arith.subf %3, %22 : vector<8x32xf32>
    %24 = math.exp %23 : vector<8x32xf32>
    %cst_8 = arith.constant dense<0.000000e+00> : vector<8xf32>
    %25 = vector.multi_reduction <add>, %24, %cst_8 [1] : vector<8x32xf32> to vector<8xf32>
    %26 = vector.shape_cast %25 : vector<8xf32> to vector<8x1xf32>
    %c0_9 = arith.constant 0 : index
    %c0_10 = arith.constant 0 : index
    %27 = vector.load %arg6[%c0_9, %c0_10] : memref<8x1xf32, #tpu.memory_space<vmem>>, vector<8x1xf32>
    %28 = arith.mulf %27, %21 : vector<8x1xf32>
    %29 = arith.addf %28, %26 : vector<8x1xf32>
    %c0_11 = arith.constant 0 : index
    %c0_12 = arith.constant 0 : index
    %30 = vector.load %arg6[%c0_11, %c0_12] : memref<8x1xf32, #tpu.memory_space<vmem>>, vector<8x1xf32>
    tpu.vector_store %arg6[%c0_11, %c0_12], %29 {strides = array<i32>} : memref<8x1xf32, #tpu.memory_space<vmem>>, vector<8x1xf32>,
    %c0_13 = arith.constant 0 : index
    %c0_14 = arith.constant 0 : index
    %31 = vector.load %arg7[%c0_13, %c0_14] : memref<8x1xf32, #tpu.memory_space<vmem>>, vector<8x1xf32>
    %32 = arith.addf %31, %17 : vector<8x1xf32>
    %c0_15 = arith.constant 0 : index
    %c0_16 = arith.constant 0 : index
    %33 = vector.load %arg7[%c0_15, %c0_16] : memref<8x1xf32, #tpu.memory_space<vmem>>, vector<8x1xf32>
    tpu.vector_store %arg7[%c0_15, %c0_16], %32 {strides = array<i32>} : memref<8x1xf32, #tpu.memory_space<vmem>>, vector<8x1xf32>,
    %c0_17 = arith.constant 0 : index
    %c0_18 = arith.constant 0 : index
    %34 = vector.load %arg5[%c0_17, %c0_18] : memref<8x1xf32, #tpu.memory_space<vmem>>, vector<8x1xf32>
    tpu.vector_store %arg5[%c0_17, %c0_18], %19 {strides = array<i32>} : memref<8x1xf32, #tpu.memory_space<vmem>>, vector<8x1xf32>,
    %c0_i32_19 = arith.constant 0 : i32
    %35 = arith.cmpi eq, %arg1, %c0_i32_19 : i32
    %36 = arith.extui %35 : i1 to i32
    %c0_i32_20 = arith.constant 0 : i32
    %37 = arith.cmpi ne, %36, %c0_i32_20 : i32
    scf.if %37 {
      %c0_21 = arith.constant 0 : index
      %c0_22 = arith.constant 0 : index
      %38 = vector.load %arg5[%c0_21, %c0_22] : memref<8x1xf32, #tpu.memory_space<vmem>>, vector<8x1xf32>
      %c0_23 = arith.constant 0 : index
      %c0_24 = arith.constant 0 : index
      %39 = vector.load %arg6[%c0_23, %c0_24] : memref<8x1xf32, #tpu.memory_space<vmem>>, vector<8x1xf32>
      %40 = math.log %39 : vector<8x1xf32>
      %41 = arith.addf %38, %40 : vector<8x1xf32>
      %c0_25 = arith.constant 0 : index
      %c0_26 = arith.constant 0 : index
      %42 = vector.load %arg7[%c0_25, %c0_26] : memref<8x1xf32, #tpu.memory_space<vmem>>, vector<8x1xf32>
      %43 = arith.subf %41, %42 : vector<8x1xf32>
      %c0_27 = arith.constant 0 : index
      %c0_28 = arith.constant 0 : index
      %44 = vector.load %arg4[%c0_27, %c0_28] : memref<8x1xf32, #tpu.memory_space<vmem>>, vector<8x1xf32>
      tpu.vector_store %arg4[%c0_27, %c0_28], %43 {strides = array<i32>} : memref<8x1xf32, #tpu.memory_space<vmem>>, vector<8x1xf32>,
    } else {
    }
    return
  }
  func.func @transform_0(%arg0: i32, %arg1: i32) -> (i32, i32) {
    %c0_i32 = arith.constant 0 : i32
    return %arg0, %arg1 : i32, i32
  }
  func.func @transform_1(%arg0: i32, %arg1: i32) -> (i32, i32) {
    %c0_i32 = arith.constant 0 : i32
    %c0_i32_0 = arith.constant 0 : i32
    return %arg0, %c0_i32 : i32, i32
  }
  func.func @transform_2(%arg0: i32, %arg1: i32) -> (i32, i32) {
    %c0_i32 = arith.constant 0 : i32
    %c0_i32_0 = arith.constant 0 : i32
    return %arg0, %c0_i32 : i32, i32
  }
}

</mosaic_0001>

<llo_original>
// kernel: ce_loss_forward.1
$region0: #{ce_loss_forward.1}
  #allocation0 [shape = 'u32[]', space=smem, size = 0x4, offset = 0x4, fixed_abs, tag = 'smem constant byte address 0x4 - core index']
  #allocation1 [shape = 'u32[144,128]{1,0:T(1,128)}', space=vmem, size = 0x12000, scoped, tag = 'internal scratch']
  #allocation2 [shape = 'f32[8,1]{1,0:T(8,128)}', space=vmem, size = 0x1000, scoped, tag = 'scratch operand']
  #allocation3 [shape = 'f32[8,1]{1,0:T(8,128)}', space=vmem, size = 0x1000, scoped, tag = 'scratch operand']
  #allocation4 [shape = 'f32[8,1]{1,0:T(8,128)}', space=vmem, size = 0x1000, scoped, tag = 'scratch operand']
  %s0 = inlined_call_operand.vmem [shape: f32[16,32], index: 0, kind: input, shape index: {}]
  %s1 = inlined_call_operand.vmem [shape: s32[16,1], index: 1, kind: input, shape index: {}]
  %s2 = inlined_call_operand.vmem [shape: f32[16,1], index: 2, kind: output, shape index: {}]
  %s3 = sld [smem:[#allocation0]]
  $region49: #{ce_loss_forward.1} parent=0
    _
  %s5 = ssub.s32 1, %s3
  %s6 = scalar_select 0, %s5, %s3
  loop: start=0, step=1, limit=4
  $region2: #{ce_loss_forward.1} parent=0 // loop_pre_header
    _
  $region3: #{ce_loss_forward.1} parent=0 // loop_header
    %s8 = sphi 0, %s12
    %p9 = scmp.ge.s32.totalorder %s8, 4
    %s15 = sphi 0, %s27
    %s16 = sphi 0, %s23
    %s17 = sphi 0, %s15
    %s18 = sphi 0, %s16
    %s19 = sphi 0, %s17
    %s20 = sphi 0, %s18
    %s32 = sphi 0, %s34
    %s35 = sphi 0, %s32
    %s36 = sphi 0, %s35
    %s52 = sphi 0, %s36
    %s58 = sphi 0, %s60
    %s61 = sphi 0, %s58
    %s62 = sphi 0, %s61
    %s78 = sphi 0, %s62
    %s84 = sphi 0, %s86
    %s87 = sphi 0, %s84
    %s88 = sphi 0, %s87
    %s104 = sphi 0, %s88
  $region4: #{ce_loss_forward.1} parent=0 // loop_header_branch
    %11 = sbr.rel (%p9) target = $region8
  $region5: #{ce_loss_forward.1} parent=0 // loop_body
    %s13 = ssub.s32 %s8, 1
    %s14 = ssub.s32 %s8, 2
    %s21 = sadd.s32 1, %s16
    %p22 = scmp.ge.s32.totalorder %s21, 1
    %s23 = scalar_select %p22, 0, %s21
    %s24 = sadd.s32 1, %s15
    %s25 = scalar_select %p22, %s24, %s15
    %p26 = scmp.ge.s32.totalorder %s25, 2
    %s27 = scalar_select %p26, 0, %s25
    %s28 = ssub.s32 %s15, %s27
    %s29 = ssub.s32 %s16, %s23
    %s30 = sor.u32 %s28, %s29
    %p31 = scmp.eq.s32.totalorder %s30, 0
    %s33 = sadd.s32 %s32, 1
    %s34 = scalar_select %p31, %s32, %s33
    %p37 = pneg %p31
    %p38 = scmp.eq.s32.totalorder %s8, 1
    %p39 = por %p37, %p38
    %p40 = scmp.ne.s32.totalorder %s32, %s35
    %p41 = scmp.eq.s32.totalorder %s8, 0
    %p42 = por %p40, %p41
    %p43 = scmp.ne.s32.totalorder %s32, %s35
    %p44 = scmp.eq.s32.totalorder %s13, 1
    %p45 = por %p43, %p44
    %p46 = scmp.ne.s32.totalorder %s35, %s36
    %p47 = scmp.eq.s32.totalorder %s13, 0
    %p48 = por %p46, %p47
    %p49 = scmp.ne.s32.totalorder %s35, %s36
    %p50 = scmp.eq.s32.totalorder %s14, 1
    %p51 = por %p49, %p50
    %p53 = scmp.ne.s32.totalorder %s36, %s52
    %p54 = scmp.eq.s32.totalorder %s14, 0
    %p55 = por %p53, %p54
    %s56 = ssub.s32 %s15, %s27
    %p57 = scmp.eq.s32.totalorder %s56, 0
    %s59 = sadd.s32 %s58, 1
    %s60 = scalar_select %p57, %s58, %s59
    %p63 = pneg %p57
    %p64 = scmp.eq.s32.totalorder %s8, 1
    %p65 = por %p63, %p64
    %p66 = scmp.ne.s32.totalorder %s58, %s61
    %p67 = scmp.eq.s32.totalorder %s8, 0
    %p68 = por %p66, %p67
    %p69 = scmp.ne.s32.totalorder %s58, %s61
    %p70 = scmp.eq.s32.totalorder %s13, 1
    %p71 = por %p69, %p70
    %p72 = scmp.ne.s32.totalorder %s61, %s62
    %p73 = scmp.eq.s32.totalorder %s13, 0
    %p74 = por %p72, %p73
    %p75 = scmp.ne.s32.totalorder %s61, %s62
    %p76 = scmp.eq.s32.totalorder %s14, 1
    %p77 = por %p75, %p76
    %p79 = scmp.ne.s32.totalorder %s62, %s78
    %p80 = scmp.eq.s32.totalorder %s14, 0
    %p81 = por %p79, %p80
    %s82 = ssub.s32 %s15, %s27
    %p83 = scmp.eq.s32.totalorder %s82, 0
    %s85 = sadd.s32 %s84, 1
    %s86 = scalar_select %p83, %s84, %s85
    %p89 = pneg %p83
    %p90 = scmp.eq.s32.totalorder %s8, 1
    %p91 = por %p89, %p90
    %p92 = scmp.ne.s32.totalorder %s84, %s87
    %p93 = scmp.eq.s32.totalorder %s8, 0
    %p94 = por %p92, %p93
    %p95 = scmp.ne.s32.totalorder %s84, %s87
    %p96 = scmp.eq.s32.totalorder %s13, 1
    %p97 = por %p95, %p96
    %p98 = scmp.ne.s32.totalorder %s87, %s88
    %p99 = scmp.eq.s32.totalorder %s13, 0
    %p100 = por %p98, %p99
    %p101 = scmp.ne.s32.totalorder %s87, %s88
    %p102 = scmp.eq.s32.totalorder %s14, 1
    %p103 = por %p101, %p102
    %p105 = scmp.ne.s32.totalorder %s88, %s104
    %p106 = scmp.eq.s32.totalorder %s14, 0
    %p107 = por %p105, %p106
    %p108 = scmp.le.s32.totalorder 1, %s8
    %p109 = scmp.lt.s32.totalorder %s8, 3
    %p110 = pnand %p108, %p109
    %p111 = pneg %p110
    // Predicated region
    $region9: #{ce_loss_forward.1} parent=5 // pred_check
      _
    $region10: #{ce_loss_forward.1} parent=5 // pred_check_branch
      %113 = sbr.rel (%p110) target = $region12
    $region11: #{ce_loss_forward.1} parent=5 // pred_region
      %s114 = ssub.s32 %s8, 1
    $region12: #{ce_loss_forward.1} parent=5 // pred_fallthru
      _
    %p115 = scmp.lt.s32.totalorder %s8, 2
    // Predicated region
    $region13: #{ce_loss_forward.1} parent=5 // pred_check
      %p116 = pneg %p115
    $region14: #{ce_loss_forward.1} parent=5 // pred_check_branch
      %118 = sbr.rel (%p116) target = $region16
    $region15: #{ce_loss_forward.1} parent=5 // pred_region
      // Predicated region
      $region17: #{ce_loss_forward.1} parent=15 // pred_check
        %p119 = pneg %p42
      $region18: #{ce_loss_forward.1} parent=15 // pred_check_branch
        %121 = sbr.rel (%p119) target = $region20
      $region19: #{ce_loss_forward.1} parent=15 // pred_region
        %p122 = scmp.lt.s32.totalorder %s15, 1
        %s123 = scalar_select %p122, %s15, 1
        %p124 = scmp.lt.s32.totalorder %s16, 0
        %s125 = scalar_select %p124, %s16, 0
        %s126 = sadd.s32 %s125, %s123
        %s127 = smul.addr %s126, 8
        %s128 = scalar_lea.vmem %s0, %s127
      $region20: #{ce_loss_forward.1} parent=15 // pred_fallthru
        _
      // Predicated region
      $region21: #{ce_loss_forward.1} parent=15 // pred_check
        %p129 = pneg %p68
      $region22: #{ce_loss_forward.1} parent=15 // pred_check_branch
        %131 = sbr.rel (%p129) target = $region24
      $region23: #{ce_loss_forward.1} parent=15 // pred_region
        %p132 = scmp.lt.s32.totalorder %s15, 1
        %s133 = scalar_select %p132, %s15, 1
        %s134 = smul.addr %s133, 8
        %s135 = scalar_lea.vmem %s1, %s134
      $region24: #{ce_loss_forward.1} parent=15 // pred_fallthru
        _
    $region16: #{ce_loss_forward.1} parent=5 // pred_fallthru
      _
    %p136 = scmp.le.s32.totalorder 1, %s8
    %p137 = scmp.lt.s32.totalorder %s8, 3
    %p138 = pnand %p136, %p137
    %p139 = pneg %p138
    // Predicated region
    $region25: #{ce_loss_forward.1} parent=5 // pred_check
      _
    $region26: #{ce_loss_forward.1} parent=5 // pred_check_branch
      %141 = sbr.rel (%p138) target = $region28
    $region27: #{ce_loss_forward.1} parent=5 // pred_region
      %s142 = ssub.s32 %s8, 1
      %p143 = scmp.lt.s32.totalorder %s17, 1
      %s144 = scalar_select %p143, %s17, 1
      %p145 = scmp.lt.s32.totalorder %s18, 0
      %s146 = scalar_select %p145, %s18, 0
      %s147 = sadd.s32 %s146, %s144
      %s148 = smul.addr %s147, 8
      %s149 = scalar_lea.vmem %s0, %s148
      %p150 = pneg %p48
      %p151 = pneg %p45
      %p152 = scmp.lt.s32.totalorder %s17, 1
      %s153 = scalar_select %p152, %s17, 1
      %s154 = smul.addr %s153, 8
      %s155 = scalar_lea.vmem %s1, %s154
      %p156 = pneg %p74
      %p157 = pneg %p71
      %p158 = pneg %p100
      %p159 = pneg %p97
      %p160 = scmp.lt.s32.totalorder %s17, 1
      %s161 = scalar_select %p160, %s17, 1
      %s162 = smul.addr %s161, 8
      %s163 = scalar_lea.vmem %s2, %s162
      %p164 = scmp.lt.s32.totalorder %s17, 1
      %s165 = scalar_select %p164, %s17, 1
      %p166 = scmp.lt.s32.totalorder %s18, 0
      %s167 = scalar_select %p166, %s18, 0
      %s168 = sadd.s32 %s167, %s165
      %s169 = smul.addr %s168, 8
      %s170 = scalar_lea.vmem %s0, %s169
      %p171 = scmp.lt.s32.totalorder %s17, 1
      %s172 = scalar_select %p171, %s17, 1
      %s173 = smul.addr %s172, 8
      %s174 = scalar_lea.vmem %s1, %s173
      %p175 = scmp.lt.s32.totalorder %s17, 1
      %s176 = scalar_select %p175, %s17, 1
      %s177 = smul.addr %s176, 8
      %s178 = scalar_lea.vmem %s2, %s177
      %p179 = scmp.eq.s32.totalorder %s18, 0
      // Predicated region
      $region29: #{ce_loss_forward.1} parent=27 // pred_check
        %p180 = pneg %p179
      $region30: #{ce_loss_forward.1} parent=27 // pred_check_branch
        %182 = sbr.rel (%p180) target = $region32
      $region31: #{ce_loss_forward.1} parent=27 // pred_region
        %vm183 = vcmask 7168
        %184 = vst.msk [vmem:[#allocation2] sm:$0xff] %vm183, -1e+30
        %185 = vst.msk [vmem:[#allocation3] sm:$0xff] %vm183, 0.0
        %186 = vst.msk [vmem:[#allocation4] sm:$0xff] %vm183, 0.0
      $region32: #{ce_loss_forward.1} parent=27 // pred_fallthru
        _
      %v187 = vld [vmem:[%s170] sm:$0xff]
      %v188 = vld [vmem:[%s174] sm:$0xff]
      %v189 = vlaneseq
      %v190 = vand.u32 %v189, 127
      %s191 = smul.u32 %s18, 32
      %v192 = vstv %s191
      %v193 = vadd.s32 %v190, %v192
      %vm194 = vcmask 261120
      %v195 = vsel %vm194, %v187, -inf
      %196 = vmax.xlane.f32.xlu0 %v195
      %v197 = vpop.xlane.xlu0 %196
      %198 = vset.pattern.permute.xlu0 0
      %199 = vperm.xlu0 %198, %v188
      %v200 = vpop.permute.xlu0 %199
      %vm201 = vcmp.eq.s32.totalorder %v193, %v200
      %v202 = vsel %vm201, %v187, 0.0
      %v203 = vsel %vm194, %v202, 0.0
      %204 = vadd.xlane.f32.xlu0 %v203
      %v205 = vpop.xlane.xlu0 %204
      %v206 = vld [vmem:[#allocation2] sm:$0xff]
      %v207 = vmax.f32 %v206, %v197
      %v208 = vsub.f32 %v206, %v207
      %v209 = vmul.f32 %v208, 1.442695
      %v210 = vpow.pop %v209
      %212 = vset.pattern.permute.xlu0 0
      %213 = vperm.xlu0 %212, %v207
      %v214 = vpop.permute.xlu0 %213
      %v216 = vsub.f32 %v187, %v214
      %v217 = vmul.f32 %v216, 1.442695
      %v218 = vpow.pop %v217
      %v219 = vsel %vm194, %v218, 0.0
      %220 = vadd.xlane.f32.xlu0 %v219
      %v221 = vpop.xlane.xlu0 %220
      %v222 = vld [vmem:[#allocation3] sm:$0xff]
      %v223 = vmul.f32 %v222, %v210
      %v224 = vadd.f32 %v223, %v221
      %vm225 = vcmask 7168
      %226 = vst.msk [vmem:[#allocation3] sm:$0xff] %vm225, %v224
      %v227 = vld [vmem:[#allocation4] sm:$0xff]
      %v228 = vadd.f32 %v227, %v205
      %229 = vst.msk [vmem:[#allocation4] sm:$0xff] %vm225, %v228
      %230 = vst.msk [vmem:[#allocation2] sm:$0xff] %vm225, %v207
      // Predicated region
      $region33: #{ce_loss_forward.1} parent=27 // pred_check
        %p231 = pneg %p179
      $region34: #{ce_loss_forward.1} parent=27 // pred_check_branch
        %233 = sbr.rel (%p231) target = $region36
      $region35: #{ce_loss_forward.1} parent=27 // pred_region
        %v234 = vld [vmem:[#allocation2] sm:$0xff]
        %v235 = vld [vmem:[#allocation3] sm:$0xff]
        %v236 = vlog2.pop %v235
        %v237 = vmul.f32 %v236, 0.6931472
        %v238 = vadd.f32 %v234, %v237
        %v239 = vld [vmem:[#allocation4] sm:$0xff]
        %v240 = vsub.f32 %v238, %v239
        %241 = vst.msk [vmem:[%s178] sm:$0xff] %vm225, %v240
      $region36: #{ce_loss_forward.1} parent=27 // pred_fallthru
        _
      %p242 = scmp.lt.s32.totalorder %s17, 1
      %s243 = scalar_select %p242, %s17, 1
      %s244 = smul.addr %s243, 8
      %s245 = scalar_lea.vmem %s2, %s244
      // Predicated region
      $region37: #{ce_loss_forward.1} parent=27 // pred_check
        %p246 = pneg %p97
      $region38: #{ce_loss_forward.1} parent=27 // pred_check_branch
        %248 = sbr.rel (%p246) target = $region40
      $region39: #{ce_loss_forward.1} parent=27 // pred_region
        _
      $region40: #{ce_loss_forward.1} parent=27 // pred_fallthru
        _
    $region28: #{ce_loss_forward.1} parent=5 // pred_fallthru
      _
    %p249 = scmp.le.s32.totalorder 2, %s8
    // Predicated region
    $region41: #{ce_loss_forward.1} parent=5 // pred_check
      %p250 = pneg %p249
    $region42: #{ce_loss_forward.1} parent=5 // pred_check_branch
      %252 = sbr.rel (%p250) target = $region44
    $region43: #{ce_loss_forward.1} parent=5 // pred_region
      %s253 = ssub.s32 %s8, 2
      // Predicated region
      $region45: #{ce_loss_forward.1} parent=43 // pred_check
        %p254 = pneg %p103
      $region46: #{ce_loss_forward.1} parent=43 // pred_check_branch
        %256 = sbr.rel (%p254) target = $region48
      $region47: #{ce_loss_forward.1} parent=43 // pred_region
        %p257 = scmp.lt.s32.totalorder %s19, 1
        %s258 = scalar_select %p257, %s19, 1
        %s259 = smul.addr %s258, 8
        %s260 = scalar_lea.vmem %s2, %s259
      $region48: #{ce_loss_forward.1} parent=43 // pred_fallthru
        _
    $region44: #{ce_loss_forward.1} parent=5 // pred_fallthru
      _
  $region6: #{ce_loss_forward.1} parent=0 // loop_footer
    %s12 = sadd.s32 1, %s8
  $region7: #{ce_loss_forward.1} parent=0 // loop_footer_branch
    %7 = sbr.rel target = $region3
  $region8: #{ce_loss_forward.1} parent=0 // loop_exit
    _

</llo_original>
